<compile_context>
chip_gen: v7x
topology: tpu7x:2x2x1
jax: 0.10.0
libtpu: 0.0.40
codegen_flags: <defaults>
</compile_context>

<pallas_src>
import jax
import jax.numpy as jnp
from jax.experimental import pallas as pl
from jax.experimental.pallas import tpu as pltpu


def _normalize_kernel(img_ref, scale_ref, bias_ref, out_ref):
    # img_ref/out_ref: (rb, cb) tiles; scale_ref/bias_ref: (rb, 1) float32 tiles.
    x = img_ref[...].astype(jnp.float32)
    y = x * scale_ref[...] + bias_ref[...]          # lane-broadcast mul + add
    out_ref[...] = y.astype(out_ref.dtype)


def _round_up(x, m):
    return -(-x // m) * m


def _divisors_multiple_of(n, m):
    """Divisors of n that are multiples of m (ascending)."""
    out = []
    i = 1
    while i * i <= n:
        if n % i == 0:
            for d in (i, n // i):
                if d % m == 0:
                    out.append(d)
        i += 1
    return sorted(set(out))


def _target_block_bytes():
    """Per-direction (input-block) byte target, per TPU generation."""
    try:
        kind = jax.devices()[0].device_kind.lower()
    except Exception:  # pragma: no cover
        kind = ""
    if "v5" in kind:
        return 2 << 20    # 16 MiB scoped default -> keep total well under it
    if "v7" in kind:
        return 6 << 20    # 3.2 TB/s wants bigger steps; 64 MiB physical VMEM
    return 4 << 20        # v6e / default: 2-4 MiB already ~85% of roofline


def _pick_lane_tile(hw, max_lane=4096):
    """Lane tile: multiple of 128 dividing the 128-aligned HW, capped at max_lane."""
    hw_pad = _round_up(hw, 128)
    divs = [d for d in _divisors_multiple_of(hw_pad, 128) if d <= max_lane]
    cb = max(divs) if divs else 128
    return cb, hw_pad


def _pick_row_tile(rows, row_pack, cb, itemsize, target_bytes, lane_steps):
    """Row tile: multiple of row_pack; budget covers in+out blocks and the
    lane-padded f32 scale/bias tiles (x2 for double buffering happens outside)."""
    bytes_per_row = cb * itemsize * 2 + 2 * 128 * 4   # in + out + scale + bias
    max_rows = max(row_pack,
                   int(2 * target_bytes // bytes_per_row) // row_pack * row_pack)

    if rows % row_pack != 0 and rows <= max_rows:
        # Small, misaligned row count: one full-dim row block, no padding copy.
        return rows, rows

    rows_pad = _round_up(rows, row_pack)
    divs = [d for d in _divisors_multiple_of(rows_pad, row_pack) if d <= max_rows]
    if not divs:
        divs = [row_pack]
    # Prefer the largest tile that still leaves >= 4 total grid steps (so the
    # DMA pipeline actually spins up, incl. per-core on v7x); else largest.
    good = [d for d in divs if (rows_pad // d) * lane_steps >= 4]
    rb = max(good) if good else max(divs)
    return rb, rows_pad


def normalization(img, mean, std):
    """(img - mean[:, None, None]) / std[:, None, None] for NCHW img."""
    N, C, H, W = img.shape
    HW = H * W
    rows = N * C
    itemsize = jnp.dtype(img.dtype).itemsize
    row_pack = 8 * max(1, 4 // itemsize)            # 8 f32 / 16 bf16 / 32 int8

    # Per-channel constants in float32, fused into one mul + add.
    mean32 = jnp.asarray(mean).reshape(-1).astype(jnp.float32)
    std32 = jnp.asarray(std).reshape(-1).astype(jnp.float32)
    scale_c = 1.0 / std32                           # 1/std
    bias_c = -mean32 / std32                        # -mean/std

    target_bytes = _target_block_bytes()
    cb, hw_pad = _pick_lane_tile(HW)
    lane_steps = hw_pad // cb
    rb, rows_pad = _pick_row_tile(rows, row_pack, cb, itemsize, target_bytes,
                                  lane_steps)

    # Lane-dense 2-D layout: rows = N*C, lanes = H*W (padded only if needed).
    img2 = img.reshape(rows, HW)
    if rows_pad != rows or hw_pad != HW:
        img2 = jnp.pad(img2, ((0, rows_pad - rows), (0, hw_pad - HW)))

    scale_rows = jnp.tile(scale_c, N)               # (N*C,), row r -> channel r % C
    bias_rows = jnp.tile(bias_c, N)
    if rows_pad != rows:
        scale_rows = jnp.pad(scale_rows, (0, rows_pad - rows))
        bias_rows = jnp.pad(bias_rows, (0, rows_pad - rows))
    scale2 = scale_rows.reshape(rows_pad, 1)
    bias2 = bias_rows.reshape(rows_pad, 1)

    # VMEM: 2 buffers x (in block + out block + lane-padded scale/bias) + margin.
    block_bytes = rb * cb * itemsize
    side_bytes = 2 * rb * 128 * 4
    vmem_limit = int(min(2 * (2 * block_bytes + side_bytes) + (8 << 20), 48 << 20))

    grid = (rows_pad // rb, hw_pad // cb)

    out2 = pl.pallas_call(
        _normalize_kernel,
        out_shape=jax.ShapeDtypeStruct((rows_pad, hw_pad), img.dtype),
        grid=grid,
        in_specs=[
            pl.BlockSpec((rb, cb), lambda r, h: (r, h)),   # img tile
            pl.BlockSpec((rb, 1), lambda r, h: (r, 0)),    # scale (per-row)
            pl.BlockSpec((rb, 1), lambda r, h: (r, 0)),    # bias  (per-row)
        ],
        out_specs=pl.BlockSpec((rb, cb), lambda r, h: (r, h)),
        compiler_params=pltpu.CompilerParams(
            dimension_semantics=("parallel", "parallel"),
            vmem_limit_bytes=vmem_limit,
        ),
        # TODO(synk): add input_output_aliases={0: 0} when the caller can donate img.
    )(img2, scale2, bias2)

    out = out2
    if rows_pad != rows or hw_pad != HW:
        out = out2[:rows, :HW]
    return out.reshape(N, C, H, W)


if __name__ == "__main__":
    key = jax.random.PRNGKey(0)
    k_img, _ = jax.random.split(key)

    # Small, deterministic example: batch=2, channels=3 (RGB-style), 16x16 spatial.
    N, C, H, W = 2, 3, 16, 16
    img = jax.random.uniform(k_img, (N, C, H, W), dtype=jnp.float32)

    # Deterministic per-channel mean/std (ImageNet-style constants).
    mean = jnp.array([0.485, 0.456, 0.406], dtype=jnp.float32)
    std = jnp.array([0.229, 0.224, 0.225], dtype=jnp.float32)

    out = normalization(img, mean, std)
    out = jax.block_until_ready(out)

    # Reference check against plain-JAX broadcasting semantics (matches PyTorch).
    ref = (img - mean.reshape(-1, 1, 1)) / std.reshape(-1, 1, 1)
    assert out.shape == img.shape and out.dtype == img.dtype
    # mul-by-reciprocal vs divide differs by ~1 ulp; 1e-5 tolerance covers it.
    assert jnp.allclose(out, ref, atol=1e-5, rtol=1e-5)

    print("KERNEL_OK")
</pallas_src>

<mosaic_0001>
module attributes {stable_mosaic.version = 11 : i64} {
  func.func @_normalize_kernel(%arg0: i32, %arg1: i32, %arg2: memref<6x256xf32, #tpu.memory_space<vmem>>, %arg3: memref<6x1xf32, #tpu.memory_space<vmem>>, %arg4: memref<6x1xf32, #tpu.memory_space<vmem>>, %arg5: memref<6x256xf32, #tpu.memory_space<vmem>>) attributes {dimension_semantics = [#tpu.dimension_semantics<parallel>, #tpu.dimension_semantics<parallel>], iteration_bounds = array<i64: 1, 1>, scalar_prefetch = 0 : i64, scratch_operands = 0 : i64, tpu.core_type = #tpu.core_type<tc>, window_params = [{transform_indices = @transform_0, window_bounds = array<i64: 6, 256>}, {transform_indices = @transform_1, window_bounds = array<i64: 6, 1>}, {transform_indices = @transform_2, window_bounds = array<i64: 6, 1>}, {transform_indices = @transform_3, window_bounds = array<i64: 6, 256>}]} {
    %c0 = arith.constant 0 : index
    %c0_0 = arith.constant 0 : index
    %0 = vector.load %arg2[%c0, %c0_0] : memref<6x256xf32, #tpu.memory_space<vmem>>, vector<6x256xf32>
    %c0_1 = arith.constant 0 : index
    %c0_2 = arith.constant 0 : index
    %1 = vector.load %arg3[%c0_1, %c0_2] : memref<6x1xf32, #tpu.memory_space<vmem>>, vector<6x1xf32>
    %2 = vector.broadcast %1 : vector<6x1xf32> to vector<6x256xf32>
    %3 = arith.mulf %0, %2 : vector<6x256xf32>
    %c0_3 = arith.constant 0 : index
    %c0_4 = arith.constant 0 : index
    %4 = vector.load %arg4[%c0_3, %c0_4] : memref<6x1xf32, #tpu.memory_space<vmem>>, vector<6x1xf32>
    %5 = vector.broadcast %4 : vector<6x1xf32> to vector<6x256xf32>
    %6 = arith.addf %3, %5 : vector<6x256xf32>
    %c0_5 = arith.constant 0 : index
    %c0_6 = arith.constant 0 : index
    %7 = vector.load %arg5[%c0_5, %c0_6] : memref<6x256xf32, #tpu.memory_space<vmem>>, vector<6x256xf32>
    tpu.vector_store %arg5[%c0_5, %c0_6], %6 {strides = array<i32>} : memref<6x256xf32, #tpu.memory_space<vmem>>, vector<6x256xf32>,
    return
  }
  func.func @transform_0(%arg0: i32, %arg1: i32) -> (i32, i32) {
    %c0_i32 = arith.constant 0 : i32
    return %arg0, %arg1 : i32, i32
  }
  func.func @transform_1(%arg0: i32, %arg1: i32) -> (i32, i32) {
    %c0_i32 = arith.constant 0 : i32
    %c0_i32_0 = arith.constant 0 : i32
    return %arg0, %c0_i32 : i32, i32
  }
  func.func @transform_2(%arg0: i32, %arg1: i32) -> (i32, i32) {
    %c0_i32 = arith.constant 0 : i32
    %c0_i32_0 = arith.constant 0 : i32
    return %arg0, %c0_i32 : i32, i32
  }
  func.func @transform_3(%arg0: i32, %arg1: i32) -> (i32, i32) {
    %c0_i32 = arith.constant 0 : i32
    return %arg0, %arg1 : i32, i32
  }
}

</mosaic_0001>

<llo_original>
// kernel: tpu_custom_call.1
$region0: #{tpu_custom_call.1}
  #allocation0 [shape = 'u32[]', space=smem, size = 0x4, offset = 0x4, fixed_abs, tag = 'smem constant byte address 0x4 - core index']
  #allocation1 [shape = 'u32[144,128]{1,0:T(1,128)}', space=vmem, size = 0x12000, scoped, tag = 'internal scratch']
  %s0 = inlined_call_operand.vmem [shape: f32[6,256], index: 0, kind: input, shape index: {}]
  %s1 = inlined_call_operand.vmem [shape: f32[6,1], index: 1, kind: input, shape index: {}]
  %s2 = inlined_call_operand.vmem [shape: f32[6,1], index: 2, kind: input, shape index: {}]
  %s3 = inlined_call_operand.hbm [shape: f32[6,256], index: 3, kind: output, shape index: {}]
  %s4 = sld [smem:[#allocation0]]
  $region22: #{tpu_custom_call.1} parent=0
    _
  %s6 = ssub.s32 1, %s4
  %s7 = scalar_select 0, %s6, %s4
  $region1: #{tpu_custom_call.1} parent=0
    #allocation2 [shape = 'u8[8192]{0}', space=vmem, size = 0x2000, scoped, tag = 'output window, operand 0, single buffered']
    #allocation3 [shape = 's32[1]{0}', space=sflag, size = 0x4, scoped, tag = 'scoped memory for tpu_custom_call.1']
    %8 = vsyncpa [#allocation3], 0
    // Predicated region
    $region2: #{tpu_custom_call.1} parent=1 // pred_check
      _
    $region3: #{tpu_custom_call.1} parent=1 // pred_check_branch
      %10 = sbr.rel (0) target = $region5
    $region4: #{tpu_custom_call.1} parent=1 // pred_region
      _
    $region5: #{tpu_custom_call.1} parent=1 // pred_fallthru
      _
    // Predicated region
    $region6: #{tpu_custom_call.1} parent=1 // pred_check
      _
    $region7: #{tpu_custom_call.1} parent=1 // pred_check_branch
      %12 = sbr.rel (0) target = $region9
    $region8: #{tpu_custom_call.1} parent=1 // pred_region
      _
    $region9: #{tpu_custom_call.1} parent=1 // pred_fallthru
      _
    // Predicated region
    $region10: #{tpu_custom_call.1} parent=1 // pred_check
      _
    $region11: #{tpu_custom_call.1} parent=1 // pred_check_branch
      %14 = sbr.rel (0) target = $region13
    $region12: #{tpu_custom_call.1} parent=1 // pred_region
      _
    $region13: #{tpu_custom_call.1} parent=1 // pred_fallthru
      _
    %v15 = vld [vmem:[%s0] sm:$0x3f]
    %v16 = vld [vmem:[%s0 + $0x8] sm:$0x3f]
    %v17 = vld [vmem:[%s1] sm:$0x3f]
    %19 = vset.pattern.permute.xlu0 0
    %20 = vperm.xlu0 %19, %v17
    %v21 = vpop.permute.xlu0 %20
    %v23 = vmul.f32 %v15, %v21
    %v24 = vmul.f32 %v16, %v21
    %v25 = vld [vmem:[%s2] sm:$0x3f]
    %27 = vset.pattern.permute.xlu0 0
    %28 = vperm.xlu0 %27, %v25
    %v29 = vpop.permute.xlu0 %28
    %v31 = vadd.f32 %v23, %v29
    %v32 = vadd.f32 %v24, %v29
    %33 = vst [vmem:[#allocation2] sm:$0x3f] %v31
    %34 = vst [vmem:[#allocation2 + $0x8] sm:$0x3f] %v32
    // Predicated region
    $region14: #{tpu_custom_call.1} parent=1 // pred_check
      _
    $region15: #{tpu_custom_call.1} parent=1 // pred_check_branch
      %36 = sbr.rel (0) target = $region17
    $region16: #{tpu_custom_call.1} parent=1 // pred_region
      %s38 = ssub.s32 256, 256
      %39 = vsyncadd [#allocation3], %s38
      %s41 = sshll.u32 [#allocation2], 4
      %s42 = int_to_ptr.vmem [resolvable:$true] %s41
      %44 = dma.vmem_to_hbm [thread:$0]  %s42, 256, %s3, [#allocation3]
    $region17: #{tpu_custom_call.1} parent=1 // pred_fallthru
      _
    // Predicated region
    $region18: #{tpu_custom_call.1} parent=1 // pred_check
      _
    $region19: #{tpu_custom_call.1} parent=1 // pred_check_branch
      %46 = sbr.rel (0) target = $region21
    $region20: #{tpu_custom_call.1} parent=1 // pred_region
      %47 = dma.done [#allocation3], 256
    $region21: #{tpu_custom_call.1} parent=1 // pred_fallthru
      _
    %48 = vsyncpa [#allocation3], 1

</llo_original>
